<compile_context>
chip_gen: v6e
topology: v6e:2x2x1
jax: 0.10.0
libtpu: 0.0.40
codegen_flags: <defaults>
</compile_context>

<pallas_src>
import functools

import jax
import jax.numpy as jnp
from jax.experimental import pallas as pl
from jax.experimental.pallas import tpu as pltpu


def fused_conv_bn_relu_kernel(x_ref, w_ref, gamma_ref, beta_ref, out_ref, *,
                              height, width, eps):
    """Fused 3x3 conv (stride 1, pad 1) + BatchNorm(batch stats) + ReLU.

    x_ref:     (N, Cin_pad, (H+2)*W + 2)  channel-padded, H-padded, row-major
               flattened planes with one zero element at each end of the flat
               axis (so every 3x3 tap is one contiguous lane slice).
    w_ref:     (Cout, 9*Cin_pad) bf16 conv weight, columns ordered (ky, kx, ci).
    gamma_ref: (Cout, 1), beta_ref: (Cout, 1)  BN affine parameters (f32).
    out_ref:   (Cout, N*H*W)  lane-dense output (minor dim multiple of 128).
    """
    N, _, _ = x_ref.shape
    Cout, NHW = out_ref.shape
    H, W = height, width
    HW = H * W

    # Hoisted width-padding masks, built once and reused for every (n, ky).
    col_w = jax.lax.broadcasted_iota(jnp.int32, (1, HW), 1) % W
    not_left = col_w != 0          # tap kx=0 reads w-1: invalid at w == 0
    not_right = col_w != W - 1     # tap kx=2 reads w+1: invalid at w == W-1

    w_flat = w_ref[...]            # (Cout, 9*Cin_pad), bf16

    per_image = []
    for n in range(N):             # N is tiny & static
        xn = x_ref[n]              # (Cin_pad, (H+2)*W + 2)
        taps = []
        for ky in range(3):
            for kx in range(3):
                # Output pixel p = h*W + w reads x_hpad[h+ky, w+kx-1]; in the
                # flattened (+1 offset) layout that is one contiguous lane
                # slice starting at ky*W + kx.
                t = xn[:, ky * W + kx: ky * W + kx + HW]   # (Cin_pad, HW)
                if kx == 0:
                    t = jnp.where(not_left, t, 0.0)
                elif kx == 2:
                    t = jnp.where(not_right, t, 0.0)
                taps.append(t)
        # Cin_pad == 8 (f32 sublane count): concat is pure tile stacking.
        per_image.append(jnp.concatenate(taps, axis=0))    # (9*Cin_pad, HW)

    # Images side by side on the lane axis (HW is a multiple of 128, so this is
    # vreg-aligned stacking, no cross-lane shuffle), then a single bf16 cast.
    patches = jnp.concatenate(per_image, axis=1).astype(jnp.bfloat16)

    # One MXU matmul for the whole batch; f32 accumulation.
    y = jnp.dot(w_flat, patches,
                preferred_element_type=jnp.float32)        # (Cout, N*HW)

    # BatchNorm2d training-mode batch statistics over (N, H, W) == last axis,
    # biased variance from centered values (no catastrophic cancellation).
    # TODO(synk): running_mean / running_var buffer updates (a training-time
    # side effect of nn.BatchNorm2d) are not emitted here.
    cnt = jnp.float32(NHW)
    mean = jnp.sum(y, axis=1, keepdims=True) / cnt         # (Cout, 1)
    centered = y - mean
    var = jnp.sum(centered * centered, axis=1, keepdims=True) / cnt
    scale = gamma_ref[...] * jax.lax.rsqrt(var + eps)      # (Cout, 1)
    shift = beta_ref[...]

    # ReLU.  TODO(synk): QuantLayer is not defined in the provided source; it
    # is treated as the identity.
    out_ref[...] = jnp.maximum(centered * scale + shift, 0.0).astype(out_ref.dtype)


def basic_block_forward(x_nchw, w_oihw, gamma, beta, eps=1e-5):
    """BasicBlock forward. NCHW float32 in, NCHW float32 out (PyTorch layout)."""
    N, Cin, H, W = x_nchw.shape
    Cout = w_oihw.shape[0]
    HW = H * W

    # Layout assumptions of this kernel (pad HW / Cout in the wrapper if a
    # future config violates them).
    assert HW % 128 == 0, "H*W must be a multiple of 128 for lane-dense stores"
    assert Cout % 8 == 0, "Cout must be a multiple of 8 for clean f32 tiles"

    SUBLANES = 8                               # f32 sublane count
    cin_pad = -(-Cin // SUBLANES) * SUBLANES   # pad Cin up to a full tile
    flat_len = (H + 2) * W + 2

    # Pad channels to cin_pad, pad H by 1 (conv height padding), flatten each
    # (H+2, W) plane row-major, add one zero at each end of the flat axis so
    # every 3x3 tap is one contiguous slice in-kernel.  Width padding is done
    # in-kernel with a hoisted column mask; no NCHW<->NHWC transpose anywhere.
    x_p = jnp.pad(x_nchw, ((0, 0), (0, cin_pad - Cin), (1, 1), (0, 0)))
    x_flat = x_p.reshape(N, cin_pad, (H + 2) * W)
    x_flat = jnp.pad(x_flat, ((0, 0), (0, 0), (1, 1)))      # (N, cin_pad, flat_len)

    # OIHW -> (Cout, ky, kx, ci_pad) -> (Cout, 9*cin_pad), cast once to bf16
    # (MXU operand precision; f32 accumulation in-kernel).
    w_p = jnp.pad(w_oihw, ((0, 0), (0, cin_pad - Cin), (0, 0), (0, 0)))
    w_flat = jnp.transpose(w_p, (0, 2, 3, 1)).reshape(Cout, 9 * cin_pad)
    w_flat = w_flat.astype(jnp.bfloat16)

    kernel = functools.partial(fused_conv_bn_relu_kernel,
                               height=H, width=W, eps=eps)

    out2d = pl.pallas_call(
        kernel,
        out_shape=jax.ShapeDtypeStruct((Cout, N * HW), jnp.float32),
        grid_spec=pltpu.PrefetchScalarGridSpec(
            num_scalar_prefetch=0,
            grid=(1,),
            in_specs=[
                pl.BlockSpec((N, cin_pad, flat_len), lambda i: (0, 0, 0)),
                pl.BlockSpec((Cout, 9 * cin_pad), lambda i: (0, 0)),
                pl.BlockSpec((Cout, 1), lambda i: (0, 0)),
                pl.BlockSpec((Cout, 1), lambda i: (0, 0)),
            ],
            out_specs=pl.BlockSpec((Cout, N * HW), lambda i: (0, 0)),
        ),
        compiler_params=pltpu.CompilerParams(
            dimension_semantics=("arbitrary",)),
    )(x_flat, w_flat, gamma.reshape(Cout, 1), beta.reshape(Cout, 1))

    # Lane-dense (Cout, N*H*W) -> NCHW: a tiny XLA reshape+transpose outside
    # the kernel (16 KiB at these shapes).
    return jnp.transpose(out2d.reshape(Cout, N, H, W), (1, 0, 2, 3))


def _reference_forward(x, w_oihw, gamma, beta, eps=1e-5):
    """Pure-JAX f32 reference (conv -> BN(batch stats) -> ReLU) for validation."""
    y = jax.lax.conv_general_dilated(
        x, w_oihw, window_strides=(1, 1), padding=((1, 1), (1, 1)),
        dimension_numbers=("NCHW", "OIHW", "NCHW"),
        precision=jax.lax.Precision.HIGHEST)
    mean = y.mean(axis=(0, 2, 3), keepdims=True)
    var = y.var(axis=(0, 2, 3), keepdims=True)   # biased, like PyTorch BN
    y = (y - mean) * jax.lax.rsqrt(var + eps)
    y = y * gamma.reshape(1, -1, 1, 1) + beta.reshape(1, -1, 1, 1)
    return jnp.maximum(y, 0.0)


if __name__ == "__main__":
    # Shapes consistent with BasicBlock(in_channels=4, v=8): 3x3 conv, s=1, p=1.
    N, Cin, H, W = 2, 4, 16, 16
    Cout = 8

    key = jax.random.PRNGKey(0)
    kx_, kw_, kg_, kb_ = jax.random.split(key, 4)
    x = jax.random.normal(kx_, (N, Cin, H, W), dtype=jnp.float32)
    fan_in = Cin * 3 * 3
    w_oihw = jax.random.normal(kw_, (Cout, Cin, 3, 3), dtype=jnp.float32) * (2.0 / fan_in) ** 0.5
    # Non-default affine params to exercise the gamma/beta path.
    gamma = 1.0 + 0.1 * jax.random.normal(kg_, (Cout,), dtype=jnp.float32)
    beta = 0.1 * jax.random.normal(kb_, (Cout,), dtype=jnp.float32)

    out = basic_block_forward(x, w_oihw, gamma, beta)
    out = jax.block_until_ready(out)
    assert out.shape == (N, Cout, H, W) and out.dtype == jnp.float32

    # Precision note: the kernel feeds bf16 operands to the MXU with f32
    # accumulation; after BN the outputs are O(1), so the error vs the f32
    # reference is a few 1e-3 — tolerance below documents the bf16 choice.
    ref = _reference_forward(x, w_oihw, gamma, beta)
    max_err = float(jnp.max(jnp.abs(out - ref)))
    assert max_err < 5e-2, f"max abs error vs reference too large: {max_err}"

    print("KERNEL_OK")
</pallas_src>

<mosaic_0001>
module attributes {stable_mosaic.version = 11 : i64} {
  func.func @fused_conv_bn_relu_kernel(%arg0: i32, %arg1: memref<2x8x290xf32, #tpu.memory_space<vmem>>, %arg2: memref<8x72xbf16, #tpu.memory_space<vmem>>, %arg3: memref<8x1xf32, #tpu.memory_space<vmem>>, %arg4: memref<8x1xf32, #tpu.memory_space<vmem>>, %arg5: memref<8x512xf32, #tpu.memory_space<vmem>>) attributes {dimension_semantics = [#tpu.dimension_semantics<arbitrary>], iteration_bounds = array<i64: 1>, scalar_prefetch = 0 : i64, scratch_operands = 0 : i64, tpu.core_type = #tpu.core_type<tc>, window_params = [{pipeline_mode = #tpu.pipeline_mode<synchronous>, transform_indices = @transform_0, window_bounds = array<i64: 2, 8, 290>}, {pipeline_mode = #tpu.pipeline_mode<synchronous>, transform_indices = @transform_1, window_bounds = array<i64: 8, 72>}, {pipeline_mode = #tpu.pipeline_mode<synchronous>, transform_indices = @transform_2, window_bounds = array<i64: 8, 1>}, {pipeline_mode = #tpu.pipeline_mode<synchronous>, transform_indices = @transform_3, window_bounds = array<i64: 8, 1>}, {pipeline_mode = #tpu.pipeline_mode<synchronous>, transform_indices = @transform_4, window_bounds = array<i64: 8, 512>}]} {
    %0 = tpu.iota {dimensions = array<i32: 1>} : vector<1x256xi32>
    %c16_i32 = arith.constant 16 : i32
    %c0_i32 = arith.constant 0 : i32
    %1 = arith.cmpi eq, %c16_i32, %c0_i32 : i32
    %c1_i32 = arith.constant 1 : i32
    %2 = arith.select %1, %c1_i32, %c16_i32 : i32
    %3 = vector.broadcast %2 : i32 to vector<1x256xi32>
    %4 = arith.remsi %0, %3 : vector<1x256xi32>
    %c0_i32_0 = arith.constant 0 : i32
    %5 = vector.broadcast %c0_i32_0 : i32 to vector<1x256xi32>
    %6 = arith.cmpi ne, %4, %5 : vector<1x256xi32>
    %c0_i32_1 = arith.constant 0 : i32
    %7 = vector.broadcast %c0_i32_1 : i32 to vector<1x256xi32>
    %8 = arith.cmpi slt, %4, %7 : vector<1x256xi32>
    %c0_i32_2 = arith.constant 0 : i32
    %9 = arith.cmpi slt, %2, %c0_i32_2 : i32
    %10 = vector.broadcast %9 : i1 to vector<1x256xi1>
    %11 = vector.broadcast %10 : vector<1x256xi1> to vector<1x256xi1>
    %12 = arith.xori %8, %11 : vector<1x256xi1>
    %13 = arith.andi %12, %6 : vector<1x256xi1>
    %14 = vector.broadcast %2 : i32 to vector<1x256xi32>
    %15 = arith.addi %4, %14 : vector<1x256xi32>
    %16 = arith.select %13, %15, %4 : vector<1x256xi1>, vector<1x256xi32>
    %c0_i32_3 = arith.constant 0 : i32
    %17 = vector.broadcast %c0_i32_3 : i32 to vector<1x256xi32>
    %18 = arith.cmpi ne, %16, %17 : vector<1x256xi32>
    %c15_i32 = arith.constant 15 : i32
    %19 = vector.broadcast %c15_i32 : i32 to vector<1x256xi32>
    %20 = arith.cmpi ne, %16, %19 : vector<1x256xi32>
    %c0 = arith.constant 0 : index
    %c0_4 = arith.constant 0 : index
    %21 = vector.load %arg2[%c0, %c0_4] : memref<8x72xbf16, #tpu.memory_space<vmem>>, vector<8x72xbf16>
    %c0_5 = arith.constant 0 : index
    %c0_6 = arith.constant 0 : index
    %c0_7 = arith.constant 0 : index
    %22 = vector.load %arg1[%c0_5, %c0_6, %c0_7] : memref<2x8x290xf32, #tpu.memory_space<vmem>>, vector<1x8x290xf32>
    %23 = vector.shape_cast %22 : vector<1x8x290xf32> to vector<8x290xf32>
    %24 = vector.extract_strided_slice %23 {offsets = [0, 0], sizes = [8, 256], strides = [1, 1]} : vector<8x290xf32> to vector<8x256xf32>
    %cst = arith.constant 0.000000e+00 : f32
    %25 = vector.shape_cast %18 : vector<1x256xi1> to vector<1x256xi1>
    %26 = vector.broadcast %25 : vector<1x256xi1> to vector<8x256xi1>
    %27 = vector.broadcast %cst : f32 to vector<8x256xf32>
    %28 = arith.select %26, %24, %27 : vector<8x256xi1>, vector<8x256xf32>
    %29 = vector.extract_strided_slice %23 {offsets = [0, 1], sizes = [8, 256], strides = [1, 1]} : vector<8x290xf32> to vector<8x256xf32>
    %30 = vector.extract_strided_slice %23 {offsets = [0, 2], sizes = [8, 256], strides = [1, 1]} : vector<8x290xf32> to vector<8x256xf32>
    %cst_8 = arith.constant 0.000000e+00 : f32
    %31 = vector.shape_cast %20 : vector<1x256xi1> to vector<1x256xi1>
    %32 = vector.broadcast %31 : vector<1x256xi1> to vector<8x256xi1>
    %33 = vector.broadcast %cst_8 : f32 to vector<8x256xf32>
    %34 = arith.select %32, %30, %33 : vector<8x256xi1>, vector<8x256xf32>
    %35 = vector.extract_strided_slice %23 {offsets = [0, 16], sizes = [8, 256], strides = [1, 1]} : vector<8x290xf32> to vector<8x256xf32>
    %cst_9 = arith.constant 0.000000e+00 : f32
    %36 = vector.shape_cast %18 : vector<1x256xi1> to vector<1x256xi1>
    %37 = vector.broadcast %36 : vector<1x256xi1> to vector<8x256xi1>
    %38 = vector.broadcast %cst_9 : f32 to vector<8x256xf32>
    %39 = arith.select %37, %35, %38 : vector<8x256xi1>, vector<8x256xf32>
    %40 = vector.extract_strided_slice %23 {offsets = [0, 17], sizes = [8, 256], strides = [1, 1]} : vector<8x290xf32> to vector<8x256xf32>
    %41 = vector.extract_strided_slice %23 {offsets = [0, 18], sizes = [8, 256], strides = [1, 1]} : vector<8x290xf32> to vector<8x256xf32>
    %cst_10 = arith.constant 0.000000e+00 : f32
    %42 = vector.shape_cast %20 : vector<1x256xi1> to vector<1x256xi1>
    %43 = vector.broadcast %42 : vector<1x256xi1> to vector<8x256xi1>
    %44 = vector.broadcast %cst_10 : f32 to vector<8x256xf32>
    %45 = arith.select %43, %41, %44 : vector<8x256xi1>, vector<8x256xf32>
    %46 = vector.extract_strided_slice %23 {offsets = [0, 32], sizes = [8, 256], strides = [1, 1]} : vector<8x290xf32> to vector<8x256xf32>
    %cst_11 = arith.constant 0.000000e+00 : f32
    %47 = vector.shape_cast %18 : vector<1x256xi1> to vector<1x256xi1>
    %48 = vector.broadcast %47 : vector<1x256xi1> to vector<8x256xi1>
    %49 = vector.broadcast %cst_11 : f32 to vector<8x256xf32>
    %50 = arith.select %48, %46, %49 : vector<8x256xi1>, vector<8x256xf32>
    %51 = vector.extract_strided_slice %23 {offsets = [0, 33], sizes = [8, 256], strides = [1, 1]} : vector<8x290xf32> to vector<8x256xf32>
    %52 = vector.extract_strided_slice %23 {offsets = [0, 34], sizes = [8, 256], strides = [1, 1]} : vector<8x290xf32> to vector<8x256xf32>
    %cst_12 = arith.constant 0.000000e+00 : f32
    %53 = vector.shape_cast %20 : vector<1x256xi1> to vector<1x256xi1>
    %54 = vector.broadcast %53 : vector<1x256xi1> to vector<8x256xi1>
    %55 = vector.broadcast %cst_12 : f32 to vector<8x256xf32>
    %56 = arith.select %54, %52, %55 : vector<8x256xi1>, vector<8x256xf32>
    %57 = tpu.concatenate %28, %29, %34, %39, %40, %45, %50, %51, %56 in 0 : vector<8x256xf32>, vector<8x256xf32>, vector<8x256xf32>, vector<8x256xf32>, vector<8x256xf32>, vector<8x256xf32>, vector<8x256xf32>, vector<8x256xf32>, vector<8x256xf32> -> vector<72x256xf32>
    %c1 = arith.constant 1 : index
    %c0_13 = arith.constant 0 : index
    %c0_14 = arith.constant 0 : index
    %58 = vector.load %arg1[%c1, %c0_13, %c0_14] : memref<2x8x290xf32, #tpu.memory_space<vmem>>, vector<1x8x290xf32>
    %59 = vector.shape_cast %58 : vector<1x8x290xf32> to vector<8x290xf32>
    %60 = vector.extract_strided_slice %59 {offsets = [0, 0], sizes = [8, 256], strides = [1, 1]} : vector<8x290xf32> to vector<8x256xf32>
    %cst_15 = arith.constant 0.000000e+00 : f32
    %61 = vector.shape_cast %18 : vector<1x256xi1> to vector<1x256xi1>
    %62 = vector.broadcast %61 : vector<1x256xi1> to vector<8x256xi1>
    %63 = vector.broadcast %cst_15 : f32 to vector<8x256xf32>
    %64 = arith.select %62, %60, %63 : vector<8x256xi1>, vector<8x256xf32>
    %65 = vector.extract_strided_slice %59 {offsets = [0, 1], sizes = [8, 256], strides = [1, 1]} : vector<8x290xf32> to vector<8x256xf32>
    %66 = vector.extract_strided_slice %59 {offsets = [0, 2], sizes = [8, 256], strides = [1, 1]} : vector<8x290xf32> to vector<8x256xf32>
    %cst_16 = arith.constant 0.000000e+00 : f32
    %67 = vector.shape_cast %20 : vector<1x256xi1> to vector<1x256xi1>
    %68 = vector.broadcast %67 : vector<1x256xi1> to vector<8x256xi1>
    %69 = vector.broadcast %cst_16 : f32 to vector<8x256xf32>
    %70 = arith.select %68, %66, %69 : vector<8x256xi1>, vector<8x256xf32>
    %71 = vector.extract_strided_slice %59 {offsets = [0, 16], sizes = [8, 256], strides = [1, 1]} : vector<8x290xf32> to vector<8x256xf32>
    %cst_17 = arith.constant 0.000000e+00 : f32
    %72 = vector.shape_cast %18 : vector<1x256xi1> to vector<1x256xi1>
    %73 = vector.broadcast %72 : vector<1x256xi1> to vector<8x256xi1>
    %74 = vector.broadcast %cst_17 : f32 to vector<8x256xf32>
    %75 = arith.select %73, %71, %74 : vector<8x256xi1>, vector<8x256xf32>
    %76 = vector.extract_strided_slice %59 {offsets = [0, 17], sizes = [8, 256], strides = [1, 1]} : vector<8x290xf32> to vector<8x256xf32>
    %77 = vector.extract_strided_slice %59 {offsets = [0, 18], sizes = [8, 256], strides = [1, 1]} : vector<8x290xf32> to vector<8x256xf32>
    %cst_18 = arith.constant 0.000000e+00 : f32
    %78 = vector.shape_cast %20 : vector<1x256xi1> to vector<1x256xi1>
    %79 = vector.broadcast %78 : vector<1x256xi1> to vector<8x256xi1>
    %80 = vector.broadcast %cst_18 : f32 to vector<8x256xf32>
    %81 = arith.select %79, %77, %80 : vector<8x256xi1>, vector<8x256xf32>
    %82 = vector.extract_strided_slice %59 {offsets = [0, 32], sizes = [8, 256], strides = [1, 1]} : vector<8x290xf32> to vector<8x256xf32>
    %cst_19 = arith.constant 0.000000e+00 : f32
    %83 = vector.shape_cast %18 : vector<1x256xi1> to vector<1x256xi1>
    %84 = vector.broadcast %83 : vector<1x256xi1> to vector<8x256xi1>
    %85 = vector.broadcast %cst_19 : f32 to vector<8x256xf32>
    %86 = arith.select %84, %82, %85 : vector<8x256xi1>, vector<8x256xf32>
    %87 = vector.extract_strided_slice %59 {offsets = [0, 33], sizes = [8, 256], strides = [1, 1]} : vector<8x290xf32> to vector<8x256xf32>
    %88 = vector.extract_strided_slice %59 {offsets = [0, 34], sizes = [8, 256], strides = [1, 1]} : vector<8x290xf32> to vector<8x256xf32>
    %cst_20 = arith.constant 0.000000e+00 : f32
    %89 = vector.shape_cast %20 : vector<1x256xi1> to vector<1x256xi1>
    %90 = vector.broadcast %89 : vector<1x256xi1> to vector<8x256xi1>
    %91 = vector.broadcast %cst_20 : f32 to vector<8x256xf32>
    %92 = arith.select %90, %88, %91 : vector<8x256xi1>, vector<8x256xf32>
    %93 = tpu.concatenate %64, %65, %70, %75, %76, %81, %86, %87, %92 in 0 : vector<8x256xf32>, vector<8x256xf32>, vector<8x256xf32>, vector<8x256xf32>, vector<8x256xf32>, vector<8x256xf32>, vector<8x256xf32>, vector<8x256xf32>, vector<8x256xf32> -> vector<72x256xf32>
    %94 = tpu.concatenate %57, %93 in 1 : vector<72x256xf32>, vector<72x256xf32> -> vector<72x512xf32>
    %95 = arith.truncf %94 : vector<72x512xf32> to vector<72x512xbf16>
    %cst_21 = arith.constant dense<0.000000e+00> : vector<8x512xf32>
    %96 = tpu.matmul %21, %95, %cst_21 {dimension_numbers = #tpu.dot_dimension_numbers<[1], [0], [0], [1], [0, 0, 1, 1], [], []>} : vector<8x72xbf16>, vector<72x512xbf16>, vector<8x512xf32> -> vector<8x512xf32>
    %cst_22 = arith.constant dense<0.000000e+00> : vector<8xf32>
    %97 = vector.multi_reduction <add>, %96, %cst_22 [1] : vector<8x512xf32> to vector<8xf32>
    %98 = vector.shape_cast %97 : vector<8xf32> to vector<8x1xf32>
    %cst_23 = arith.constant 5.120000e+02 : f32
    %99 = vector.broadcast %cst_23 : f32 to vector<8x1xf32>
    %100 = arith.divf %98, %99 : vector<8x1xf32>
    %101 = vector.broadcast %100 : vector<8x1xf32> to vector<8x512xf32>
    %102 = arith.subf %96, %101 : vector<8x512xf32>
    %103 = arith.mulf %102, %102 : vector<8x512xf32>
    %cst_24 = arith.constant dense<0.000000e+00> : vector<8xf32>
    %104 = vector.multi_reduction <add>, %103, %cst_24 [1] : vector<8x512xf32> to vector<8xf32>
    %105 = vector.shape_cast %104 : vector<8xf32> to vector<8x1xf32>
    %cst_25 = arith.constant 5.120000e+02 : f32
    %106 = vector.broadcast %cst_25 : f32 to vector<8x1xf32>
    %107 = arith.divf %105, %106 : vector<8x1xf32>
    %c0_26 = arith.constant 0 : index
    %c0_27 = arith.constant 0 : index
    %108 = vector.load %arg3[%c0_26, %c0_27] : memref<8x1xf32, #tpu.memory_space<vmem>>, vector<8x1xf32>
    %cst_28 = arith.constant 9.99999974E-6 : f32
    %109 = vector.broadcast %cst_28 : f32 to vector<8x1xf32>
    %110 = arith.addf %107, %109 : vector<8x1xf32>
    %111 = math.rsqrt %110 : vector<8x1xf32>
    %112 = arith.mulf %108, %111 : vector<8x1xf32>
    %c0_29 = arith.constant 0 : index
    %c0_30 = arith.constant 0 : index
    %113 = vector.load %arg4[%c0_29, %c0_30] : memref<8x1xf32, #tpu.memory_space<vmem>>, vector<8x1xf32>
    %114 = vector.broadcast %112 : vector<8x1xf32> to vector<8x512xf32>
    %115 = arith.mulf %102, %114 : vector<8x512xf32>
    %116 = vector.broadcast %113 : vector<8x1xf32> to vector<8x512xf32>
    %117 = arith.addf %115, %116 : vector<8x512xf32>
    %cst_31 = arith.constant 0.000000e+00 : f32
    %118 = vector.broadcast %cst_31 : f32 to vector<8x512xf32>
    %119 = arith.maximumf %117, %118 : vector<8x512xf32>
    %c0_32 = arith.constant 0 : index
    %c0_33 = arith.constant 0 : index
    %120 = vector.load %arg5[%c0_32, %c0_33] : memref<8x512xf32, #tpu.memory_space<vmem>>, vector<8x512xf32>
    tpu.vector_store %arg5[%c0_32, %c0_33], %119 {strides = array<i32>} : memref<8x512xf32, #tpu.memory_space<vmem>>, vector<8x512xf32>,
    return
  }
  func.func @transform_0(%arg0: i32) -> (i32, i32, i32) {
    %c0_i32 = arith.constant 0 : i32
    %c0_i32_0 = arith.constant 0 : i32
    %c0_i32_1 = arith.constant 0 : i32
    %c0_i32_2 = arith.constant 0 : i32
    return %c0_i32, %c0_i32_0, %c0_i32_1 : i32, i32, i32
  }
  func.func @transform_1(%arg0: i32) -> (i32, i32) {
    %c0_i32 = arith.constant 0 : i32
    %c0_i32_0 = arith.constant 0 : i32
    %c0_i32_1 = arith.constant 0 : i32
    return %c0_i32, %c0_i32_0 : i32, i32
  }
  func.func @transform_2(%arg0: i32) -> (i32, i32) {
    %c0_i32 = arith.constant 0 : i32
    %c0_i32_0 = arith.constant 0 : i32
    %c0_i32_1 = arith.constant 0 : i32
    return %c0_i32, %c0_i32_0 : i32, i32
  }
  func.func @transform_3(%arg0: i32) -> (i32, i32) {
    %c0_i32 = arith.constant 0 : i32
    %c0_i32_0 = arith.constant 0 : i32
    %c0_i32_1 = arith.constant 0 : i32
    return %c0_i32, %c0_i32_0 : i32, i32
  }
  func.func @transform_4(%arg0: i32) -> (i32, i32) {
    %c0_i32 = arith.constant 0 : i32
    %c0_i32_0 = arith.constant 0 : i32
    %c0_i32_1 = arith.constant 0 : i32
    return %c0_i32, %c0_i32_0 : i32, i32
  }
}

</mosaic_0001>

<llo_original>
// kernel: tpu_custom_call.1
$region0: #{tpu_custom_call.1}
  #allocation0 [shape = 'u32[]', space=smem, size = 0x4, offset = 0x4, fixed_abs, tag = 'smem constant byte address 0x4 - core index']
  #allocation1 [shape = 'u32[144,128]{1,0:T(1,128)}', space=vmem, size = 0x12000, scoped, tag = 'internal scratch']
  %s0 = inlined_call_operand.hbm [shape: f32[2,8,290], index: 0, kind: input, shape index: {}]
  %s1 = inlined_call_operand.vmem [shape: bf16[8,72], index: 1, kind: input, shape index: {}]
  %s2 = inlined_call_operand.vmem [shape: f32[8,1], index: 2, kind: input, shape index: {}]
  %s3 = inlined_call_operand.vmem [shape: f32[8,1], index: 3, kind: input, shape index: {}]
  %s4 = inlined_call_operand.hbm [shape: f32[8,512], index: 4, kind: output, shape index: {}]
  %s5 = sld [smem:[#allocation0]]
  $region30: #{tpu_custom_call.1} parent=0
    _
  %s7 = ssub.s32 1, %s5
  %s8 = scalar_select 0, %s7, %s5
  $region1: #{tpu_custom_call.1} parent=0
    #allocation2 [shape = 'u8[24576]{0}', space=vmem, size = 0x6000, scoped, tag = 'input window, operand 0, single buffered']
    #allocation3 [shape = 's32[1]{0}', space=sflag, size = 0x4, scoped, tag = 'scoped memory for tpu_custom_call.1']
    #allocation4 [shape = 's32[1]{0}', space=sflag, size = 0x4, scoped, tag = 'scoped memory for tpu_custom_call.1']
    #allocation5 [shape = 'u8[16384]{0}', space=vmem, size = 0x4000, scoped, tag = 'output window, operand 0, single buffered']
    %9 = vsyncpa [#allocation3], 0
    %10 = vsyncpa [#allocation4], 0
    // Predicated region
    $region2: #{tpu_custom_call.1} parent=1 // pred_check
      _
    $region3: #{tpu_custom_call.1} parent=1 // pred_check_branch
      %12 = sbr.rel (0) target = $region5
    $region4: #{tpu_custom_call.1} parent=1 // pred_region
      %s14 = ssub.s32 768, 768
      %15 = vsyncadd [#allocation3], %s14
      %s16 = sshll.u32 [#allocation2], 4
      %s17 = int_to_ptr.vmem [resolvable:$true] %s16
      %22 = dma.hbm_to_vmem [thread:$0]  %s0, 768, %s17, [#allocation3], 384, 384, 24
    $region5: #{tpu_custom_call.1} parent=1 // pred_fallthru
      _
    // Predicated region
    $region6: #{tpu_custom_call.1} parent=1 // pred_check
      _
    $region7: #{tpu_custom_call.1} parent=1 // pred_check_branch
      %24 = sbr.rel (0) target = $region9
    $region8: #{tpu_custom_call.1} parent=1 // pred_region
      _
    $region9: #{tpu_custom_call.1} parent=1 // pred_fallthru
      _
    // Predicated region
    $region10: #{tpu_custom_call.1} parent=1 // pred_check
      _
    $region11: #{tpu_custom_call.1} parent=1 // pred_check_branch
      %26 = sbr.rel (0) target = $region13
    $region12: #{tpu_custom_call.1} parent=1 // pred_region
      _
    $region13: #{tpu_custom_call.1} parent=1 // pred_fallthru
      _
    // Predicated region
    $region14: #{tpu_custom_call.1} parent=1 // pred_check
      _
    $region15: #{tpu_custom_call.1} parent=1 // pred_check_branch
      %28 = sbr.rel (0) target = $region17
    $region16: #{tpu_custom_call.1} parent=1 // pred_region
      _
    $region17: #{tpu_custom_call.1} parent=1 // pred_fallthru
      _
    // Predicated region
    $region18: #{tpu_custom_call.1} parent=1 // pred_check
      _
    $region19: #{tpu_custom_call.1} parent=1 // pred_check_branch
      %30 = sbr.rel (0) target = $region21
    $region20: #{tpu_custom_call.1} parent=1 // pred_region
      %31 = dma.done [#allocation3], 768
    $region21: #{tpu_custom_call.1} parent=1 // pred_fallthru
      _
    %v33 = vlaneseq
    %v34 = vand.u32 %v33, 127
    %v35 = vadd.s32 %v34, 128
    %vm36 = vcmp.lt.s32.totalorder %v34, 0
    %v37 = vsub.s32 0, %v34
    %v38 = vsel %vm36, %v37, %v34
    %v39 = vshrl.u32 %v38, 4
    %v40 = vand.u32 %v38, 15
    %v41 = vsub.s32 0, %v40
    %v42 = vsel %vm36, %v41, %v40
    %vm43 = vcmp.lt.s32.totalorder %v35, 0
    %v44 = vsub.s32 0, %v35
    %v45 = vsel %vm43, %v44, %v35
    %v46 = vshrl.u32 %v45, 4
    %v47 = vand.u32 %v45, 15
    %v48 = vsub.s32 0, %v47
    %v49 = vsel %vm43, %v48, %v47
    %vm50 = vcmp.ne.s32.totalorder %v42, 0
    %vm51 = vcmp.ne.s32.totalorder %v49, 0
    %vm52 = vcmp.lt.s32.totalorder %v42, 0
    %vm53 = vcmp.lt.s32.totalorder %v49, 0
    %vm54 = vmand %vm52, %vm50
    %vm55 = vmand %vm53, %vm51
    %v56 = vadd.s32 %v42, 16
    %v57 = vadd.s32 %v49, 16
    %v58 = vsel %vm54, %v56, %v42
    %v59 = vsel %vm55, %v57, %v49
    %vm60 = vcmp.ne.s32.totalorder %v58, 0
    %vm61 = vcmp.ne.s32.totalorder %v59, 0
    %vm62 = vcmp.ne.s32.totalorder %v58, 15
    %vm63 = vcmp.ne.s32.totalorder %v59, 15
    %v64 = vld [vmem:[%s1] sm:$0xf]
    %v65 = vld [vmem:[#allocation2] sm:$0xff]
    %v66 = vld [vmem:[#allocation2 + $0x8] sm:$0xff]
    %v67 = vld [vmem:[#allocation2 + $0x10] sm:$0xff]
    %v68 = vsel %vm60, 1, 0
    %v69 = vsel %vm61, 1, 0
    %vm70 = vcmp.eq.s32.totalorder %v68, 1
    %vm71 = vcmp.eq.s32.totalorder %v69, 1
    %v72 = vsel %vm70, %v65, 0.0
    %v73 = vsel %vm71, %v66, 0.0
    %v74 = vsel %vm62, 1, 0
    %v75 = vsel %vm63, 1, 0
    %vm76 = vcmp.eq.s32.totalorder %v74, 1
    %vm77 = vcmp.eq.s32.totalorder %v75, 1
    %81 = vrot.lane.b32.xlu0 %v65, 126
    %v82 = vpop.permute.xlu0 %81
    %83 = vrot.lane.b32.xlu0 %v66, 126
    %v84 = vpop.permute.xlu0 %83
    %85 = vrot.lane.b32.xlu0 %v67, 126
    %v86 = vpop.permute.xlu0 %85
    %vm87 = vcmask 1031168
    %v88 = vsel %vm87, %v82, %v84
    %v89 = vsel %vm87, %v84, %v86
    %v92 = vsel %vm76, %v88, 0.0
    %v93 = vsel %vm77, %v89, 0.0
    %94 = vrot.lane.b32.xlu0 %v65, 112
    %v95 = vpop.permute.xlu0 %94
    %96 = vrot.lane.b32.xlu0 %v66, 112
    %v97 = vpop.permute.xlu0 %96
    %98 = vrot.lane.b32.xlu0 %v67, 112
    %v99 = vpop.permute.xlu0 %98
    %vm100 = vcmask 916480
    %v101 = vsel %vm100, %v95, %v97
    %v102 = vsel %vm100, %v97, %v99
    %v105 = vsel %vm70, %v101, 0.0
    %v106 = vsel %vm71, %v102, 0.0
    %107 = vrot.lane.b32.xlu0 %v65, 110
    %v108 = vpop.permute.xlu0 %107
    %109 = vrot.lane.b32.xlu0 %v66, 110
    %v110 = vpop.permute.xlu0 %109
    %111 = vrot.lane.b32.xlu0 %v67, 110
    %v112 = vpop.permute.xlu0 %111
    %vm113 = vcmask 900096
    %v114 = vsel %vm113, %v108, %v110
    %v115 = vsel %vm113, %v110, %v112
    %v118 = vsel %vm76, %v114, 0.0
    %v119 = vsel %vm77, %v115, 0.0
    %120 = vrot.lane.b32.xlu0 %v65, 96
    %v121 = vpop.permute.xlu0 %120
    %122 = vrot.lane.b32.xlu0 %v66, 96
    %v123 = vpop.permute.xlu0 %122
    %124 = vrot.lane.b32.xlu0 %v67, 96
    %v125 = vpop.permute.xlu0 %124
    %vm126 = vcmask 785408
    %v127 = vsel %vm126, %v121, %v123
    %v128 = vsel %vm126, %v123, %v125
    %v131 = vsel %vm70, %v127, 0.0
    %v132 = vsel %vm71, %v128, 0.0
    %133 = vrot.lane.b32.xlu0 %v65, 94
    %v134 = vpop.permute.xlu0 %133
    %135 = vrot.lane.b32.xlu0 %v66, 94
    %v136 = vpop.permute.xlu0 %135
    %137 = vrot.lane.b32.xlu0 %v67, 94
    %v138 = vpop.permute.xlu0 %137
    %vm139 = vcmask 769024
    %v140 = vsel %vm139, %v134, %v136
    %v141 = vsel %vm139, %v136, %v138
    %v144 = vsel %vm76, %v140, 0.0
    %v145 = vsel %vm77, %v141, 0.0
    %146 = vrot.lane.b32.xlu0 %v65, 127
    %v147 = vpop.permute.xlu0 %146
    %148 = vrot.lane.b32.xlu0 %v66, 127
    %v149 = vpop.permute.xlu0 %148
    %150 = vrot.lane.b32.xlu0 %v67, 127
    %v151 = vpop.permute.xlu0 %150
    %vm152 = vcmask 1039360
    %v153 = vsel %vm152, %v147, %v149
    %v154 = vsel %vm152, %v149, %v151
    %157 = vrot.lane.b32.xlu0 %v65, 111
    %v158 = vpop.permute.xlu0 %157
    %159 = vrot.lane.b32.xlu0 %v66, 111
    %v160 = vpop.permute.xlu0 %159
    %161 = vrot.lane.b32.xlu0 %v67, 111
    %v162 = vpop.permute.xlu0 %161
    %vm163 = vcmask 908288
    %v164 = vsel %vm163, %v158, %v160
    %v165 = vsel %vm163, %v160, %v162
    %168 = vrot.lane.b32.xlu0 %v65, 95
    %v169 = vpop.permute.xlu0 %168
    %170 = vrot.lane.b32.xlu0 %v66, 95
    %v171 = vpop.permute.xlu0 %170
    %172 = vrot.lane.b32.xlu0 %v67, 95
    %v173 = vpop.permute.xlu0 %172
    %vm174 = vcmask 777216
    %v175 = vsel %vm174, %v169, %v171
    %v176 = vsel %vm174, %v171, %v173
    %s179 = scalar_lea.vmem [#allocation2], 24
    %v180 = vld [vmem:[%s179] sm:$0xff]
    %v181 = vld [vmem:[%s179 + $0x8] sm:$0xff]
    %v182 = vld [vmem:[%s179 + $0x10] sm:$0xff]
    %v183 = vsel %vm70, %v180, 0.0
    %v184 = vsel %vm71, %v181, 0.0
    %188 = vrot.lane.b32.xlu0 %v180, 126
    %v189 = vpop.permute.xlu0 %188
    %190 = vrot.lane.b32.xlu0 %v181, 126
    %v191 = vpop.permute.xlu0 %190
    %192 = vrot.lane.b32.xlu0 %v182, 126
    %v193 = vpop.permute.xlu0 %192
    %v194 = vsel %vm87, %v189, %v191
    %v195 = vsel %vm87, %v191, %v193
    %v198 = vsel %vm76, %v194, 0.0
    %v199 = vsel %vm77, %v195, 0.0
    %200 = vrot.lane.b32.xlu0 %v180, 112
    %v201 = vpop.permute.xlu0 %200
    %202 = vrot.lane.b32.xlu0 %v181, 112
    %v203 = vpop.permute.xlu0 %202
    %204 = vrot.lane.b32.xlu0 %v182, 112
    %v205 = vpop.permute.xlu0 %204
    %v206 = vsel %vm100, %v201, %v203
    %v207 = vsel %vm100, %v203, %v205
    %v210 = vsel %vm70, %v206, 0.0
    %v211 = vsel %vm71, %v207, 0.0
    %212 = vrot.lane.b32.xlu0 %v180, 110
    %v213 = vpop.permute.xlu0 %212
    %214 = vrot.lane.b32.xlu0 %v181, 110
    %v215 = vpop.permute.xlu0 %214
    %216 = vrot.lane.b32.xlu0 %v182, 110
    %v217 = vpop.permute.xlu0 %216
    %v218 = vsel %vm113, %v213, %v215
    %v219 = vsel %vm113, %v215, %v217
    %v222 = vsel %vm76, %v218, 0.0
    %v223 = vsel %vm77, %v219, 0.0
    %224 = vrot.lane.b32.xlu0 %v180, 96
    %v225 = vpop.permute.xlu0 %224
    %226 = vrot.lane.b32.xlu0 %v181, 96
    %v227 = vpop.permute.xlu0 %226
    %228 = vrot.lane.b32.xlu0 %v182, 96
    %v229 = vpop.permute.xlu0 %228
    %v230 = vsel %vm126, %v225, %v227
    %v231 = vsel %vm126, %v227, %v229
    %v234 = vsel %vm70, %v230, 0.0
    %v235 = vsel %vm71, %v231, 0.0
    %236 = vrot.lane.b32.xlu0 %v180, 94
    %v237 = vpop.permute.xlu0 %236
    %238 = vrot.lane.b32.xlu0 %v181, 94
    %v239 = vpop.permute.xlu0 %238
    %240 = vrot.lane.b32.xlu0 %v182, 94
    %v241 = vpop.permute.xlu0 %240
    %v242 = vsel %vm139, %v237, %v239
    %v243 = vsel %vm139, %v239, %v241
    %v246 = vsel %vm76, %v242, 0.0
    %v247 = vsel %vm77, %v243, 0.0
    %248 = vrot.lane.b32.xlu0 %v180, 127
    %v249 = vpop.permute.xlu0 %248
    %250 = vrot.lane.b32.xlu0 %v181, 127
    %v251 = vpop.permute.xlu0 %250
    %252 = vrot.lane.b32.xlu0 %v182, 127
    %v253 = vpop.permute.xlu0 %252
    %v254 = vsel %vm152, %v249, %v251
    %v255 = vsel %vm152, %v251, %v253
    %258 = vrot.lane.b32.xlu0 %v180, 111
    %v259 = vpop.permute.xlu0 %258
    %260 = vrot.lane.b32.xlu0 %v181, 111
    %v261 = vpop.permute.xlu0 %260
    %262 = vrot.lane.b32.xlu0 %v182, 111
    %v263 = vpop.permute.xlu0 %262
    %v264 = vsel %vm163, %v259, %v261
    %v265 = vsel %vm163, %v261, %v263
    %268 = vrot.lane.b32.xlu0 %v180, 95
    %v269 = vpop.permute.xlu0 %268
    %270 = vrot.lane.b32.xlu0 %v181, 95
    %v271 = vpop.permute.xlu0 %270
    %272 = vrot.lane.b32.xlu0 %v182, 95
    %v273 = vpop.permute.xlu0 %272
    %v274 = vsel %vm174, %v269, %v271
    %v275 = vsel %vm174, %v271, %v273
    %v278 = vpack.c.bf16 %v153, %v72
    %v279 = vpack.c.bf16 %v154, %v73
    %v280 = vpack.c.bf16 %v254, %v183
    %v281 = vpack.c.bf16 %v255, %v184
    %v282 = vpack.c.bf16 %v105, %v92
    %v283 = vpack.c.bf16 %v106, %v93
    %v284 = vpack.c.bf16 %v210, %v198
    %v285 = vpack.c.bf16 %v211, %v199
    %v286 = vpack.c.bf16 %v118, %v164
    %v287 = vpack.c.bf16 %v119, %v165
    %v288 = vpack.c.bf16 %v222, %v264
    %v289 = vpack.c.bf16 %v223, %v265
    %v290 = vpack.c.bf16 %v175, %v131
    %v291 = vpack.c.bf16 %v176, %v132
    %v292 = vpack.c.bf16 %v274, %v234
    %v293 = vpack.c.bf16 %v275, %v235
    %v294 = vpack.c.bf16 %v144, %v144
    %v295 = vpack.c.bf16 %v145, %v145
    %v296 = vpack.c.bf16 %v246, %v246
    %v297 = vpack.c.bf16 %v247, %v247
    %vm298 = vcmask 588800
    %v300 = vsel %vm298, %v64, 0
    %vm302 = vcmask 1043456
    %v304 = vsel %vm302, %v294, 0
    %v307 = vsel %vm302, %v295, 0
    %v310 = vsel %vm302, %v296, 0
    %v313 = vsel %vm302, %v297, 0
    %315 = vmatprep.subr.bf16.mxu0 0
    %316 = vmatpush1.bf16.msra.mxu0 0
    %317 = vmatprep.subr.bf16.mxu0 0
    %318 = vmatpush1.bf16.msra.mxu0 0
    %319 = vmatprep.subr.bf16.mxu0 0
    %320 = vmatpush1.bf16.msra.mxu0 0
    %321 = vmatprep.subr.bf16.mxu0 %v307
    %322 = vmatpush1.bf16.msra.mxu0 %v304
    %323 = vmatprep.subr.bf16.mxu0 %v291
    %324 = vmatpush1.bf16.msra.mxu0 %v290
    %325 = vmatprep.subr.bf16.mxu0 %v287
    %326 = vmatpush1.bf16.msra.mxu0 %v286
    %327 = vmatprep.subr.bf16.mxu0 %v283
    %328 = vmatpush1.bf16.msra.mxu0 %v282
    %329 = vmatprep.subr.bf16.mxu0 %v279
    %330 = vmatpush1.bf16.msra.mxu0 %v278
    %331 = vmatprep.subr.bf16.mxu0 0
    %332 = vmatpush2.bf16.msra.mxu0 0
    %333 = vmatprep.subr.bf16.mxu0 0
    %334 = vmatpush2.bf16.msra.mxu0 0
    %335 = vmatprep.subr.bf16.mxu0 0
    %336 = vmatpush2.bf16.msra.mxu0 0
    %337 = vmatprep.subr.bf16.mxu0 0
    %338 = vmatpush2.bf16.msra.mxu0 0
    %339 = vmatprep.subr.bf16.mxu0 0
    %340 = vmatpush2.bf16.msra.mxu0 0
    %341 = vmatprep.subr.bf16.mxu0 0
    %342 = vmatpush2.bf16.msra.mxu0 0
    %343 = vmatprep.subr.bf16.mxu0 0
    %344 = vmatpush2.bf16.msra.mxu0 0
    %345 = vmatprep.subr.bf16.mxu0 0
    %346 = vmatpush2.bf16.msra.mxu0 0
    %347 = vmatprep.mubr.bf16.mxu0 0
    %348 = vmatmul.mubr.bf16.gmra.mxu0 %v300
    %v349 = vpop.f32.mrf.mxu0
    %v350 = vadd.f32 0.0, %v349
    %v351 = vpop.f32.mrf.mxu0
    %v352 = vadd.f32 0.0, %v351
    %v353 = vpop.f32.mrf.mxu0
    %v354 = vpop.f32.mrf.mxu0
    %355 = vdwg.mxu0
    %356 = vmatprep.subr.bf16.mxu0 0
    %357 = vmatpush1.bf16.msra.mxu0 0
    %358 = vmatprep.subr.bf16.mxu0 0
    %359 = vmatpush1.bf16.msra.mxu0 0
    %360 = vmatprep.subr.bf16.mxu0 0
    %361 = vmatpush1.bf16.msra.mxu0 0
    %362 = vmatprep.subr.bf16.mxu0 %v313
    %363 = vmatpush1.bf16.msra.mxu0 %v310
    %364 = vmatprep.subr.bf16.mxu0 %v293
    %365 = vmatpush1.bf16.msra.mxu0 %v292
    %366 = vmatprep.subr.bf16.mxu0 %v289
    %367 = vmatpush1.bf16.msra.mxu0 %v288
    %368 = vmatprep.subr.bf16.mxu0 %v285
    %369 = vmatpush1.bf16.msra.mxu0 %v284
    %370 = vmatprep.subr.bf16.mxu0 %v281
    %371 = vmatpush1.bf16.msra.mxu0 %v280
    %372 = vmatprep.subr.bf16.mxu0 0
    %373 = vmatpush2.bf16.msra.mxu0 0
    %374 = vmatprep.subr.bf16.mxu0 0
    %375 = vmatpush2.bf16.msra.mxu0 0
    %376 = vmatprep.subr.bf16.mxu0 0
    %377 = vmatpush2.bf16.msra.mxu0 0
    %378 = vmatprep.subr.bf16.mxu0 0
    %379 = vmatpush2.bf16.msra.mxu0 0
    %380 = vmatprep.subr.bf16.mxu0 0
    %381 = vmatpush2.bf16.msra.mxu0 0
    %382 = vmatprep.subr.bf16.mxu0 0
    %383 = vmatpush2.bf16.msra.mxu0 0
    %384 = vmatprep.subr.bf16.mxu0 0
    %385 = vmatpush2.bf16.msra.mxu0 0
    %386 = vmatprep.subr.bf16.mxu0 0
    %387 = vmatpush2.bf16.msra.mxu0 0
    %388 = vmatprep.mubr.bf16.mxu0 0
    %389 = vmatmul.mubr.bf16.gmra.mxu0 %v300
    %v390 = vpop.f32.mrf.mxu0
    %v391 = vadd.f32 0.0, %v390
    %v392 = vpop.f32.mrf.mxu0
    %v393 = vadd.f32 0.0, %v392
    %v394 = vpop.f32.mrf.mxu0
    %v395 = vpop.f32.mrf.mxu0
    %396 = vdwg.mxu0
    %v397 = vadd.f32 %v350, %v352
    %v398 = vadd.f32 %v397, %v391
    %v399 = vadd.f32 %v398, %v393
    %400 = vadd.xlane.f32.xlu0 %v399
    %v401 = vpop.xlane.xlu0 %400
    %v402 = vrcp.pop 512.0
    %v403 = vmul.f32 %v401, %v402
    %v404 = vsub.f32 %v350, %v403
    %v405 = vsub.f32 %v352, %v403
    %v406 = vsub.f32 %v391, %v403
    %v407 = vsub.f32 %v393, %v403
    %v408 = vmul.f32 %v404, %v404
    %v409 = vmul.f32 %v405, %v405
    %v410 = vmul.f32 %v406, %v406
    %v411 = vmul.f32 %v407, %v407
    %v412 = vadd.f32 %v408, %v409
    %v413 = vadd.f32 %v412, %v410
    %v414 = vadd.f32 %v413, %v411
    %415 = vadd.xlane.f32.xlu0 %v414
    %v416 = vpop.xlane.xlu0 %415
    %v417 = vmul.f32 %v416, %v402
    %v418 = vld [vmem:[%s2] sm:$0xff]
    %v419 = vadd.f32 %v417, 1e-05
    %v420 = vrsqrt.pop %v419
    %v421 = vmul.f32 %v418, %v420
    %v422 = vld [vmem:[%s3] sm:$0xff]
    %424 = vset.pattern.permute.xlu0 0
    %425 = vperm.xlu0 %424, %v421
    %v426 = vpop.permute.xlu0 %425
    %v428 = vmul.f32 %v404, %v426
    %v429 = vmul.f32 %v405, %v426
    %v430 = vmul.f32 %v406, %v426
    %v431 = vmul.f32 %v407, %v426
    %433 = vset.pattern.permute.xlu0 0
    %434 = vperm.xlu0 %433, %v422
    %v435 = vpop.permute.xlu0 %434
    %v437 = vadd.f32 %v428, %v435
    %v438 = vadd.f32 %v429, %v435
    %v439 = vadd.f32 %v430, %v435
    %v440 = vadd.f32 %v431, %v435
    %v441 = vmax.f32 %v437, 0.0
    %v442 = vmax.f32 %v438, 0.0
    %v443 = vmax.f32 %v439, 0.0
    %v444 = vmax.f32 %v440, 0.0
    %445 = vst [vmem:[#allocation5] sm:$0xff] %v441
    %446 = vst [vmem:[#allocation5 + $0x8] sm:$0xff] %v442
    %447 = vst [vmem:[#allocation5 + $0x10] sm:$0xff] %v443
    %448 = vst [vmem:[#allocation5 + $0x18] sm:$0xff] %v444
    // Predicated region
    $region22: #{tpu_custom_call.1} parent=1 // pred_check
      _
    $region23: #{tpu_custom_call.1} parent=1 // pred_check_branch
      %450 = sbr.rel (0) target = $region25
    $region24: #{tpu_custom_call.1} parent=1 // pred_region
      %s452 = ssub.s32 512, 512
      %453 = vsyncadd [#allocation4], %s452
      %s455 = sshll.u32 [#allocation5], 4
      %s456 = int_to_ptr.vmem [resolvable:$true] %s455
      %458 = dma.vmem_to_hbm [thread:$0]  %s456, 512, %s4, [#allocation4]
    $region25: #{tpu_custom_call.1} parent=1 // pred_fallthru
      _
    // Predicated region
    $region26: #{tpu_custom_call.1} parent=1 // pred_check
      _
    $region27: #{tpu_custom_call.1} parent=1 // pred_check_branch
      %460 = sbr.rel (0) target = $region29
    $region28: #{tpu_custom_call.1} parent=1 // pred_region
      %461 = dma.done [#allocation4], 512
    $region29: #{tpu_custom_call.1} parent=1 // pred_fallthru
      _
    %462 = vsyncpa [#allocation3], 1
    %463 = vsyncpa [#allocation4], 1

</llo_original>
